<compile_context>
chip_gen: v6e
topology: v6e:2x2x1
jax: 0.10.0
libtpu: 0.0.40
codegen_flags: <defaults>
</compile_context>

<pallas_src>
import functools

import jax
import jax.numpy as jnp
from jax.experimental import pallas as pl
from jax.experimental.pallas import tpu as pltpu

LANE = 128
SUBLANE = 8


def _round_up(n, m):
    return ((n + m - 1) // m) * m


def _cdiv(a, b):
    return (a + b - 1) // b


def mlp_kernel(x_ref, w1_ref, b1_ref, w2_ref, b2_ref, o_ref):
    # fc1: (TB, D_in) @ (D_in, H_p), f32 accumulate on the MXU.
    h = jnp.dot(x_ref[...], w1_ref[...], preferred_element_type=jnp.float32)
    # Bias + ReLU epilogue in f32 (VPU).
    h = jnp.maximum(h + b1_ref[...], 0.0)
    # fc2: (TB, H_p) @ (H_p, D_out_p). Cast h to the weight dtype so a bf16
    # weight path still feeds the MXU with bf16 operands (no-op for f32).
    out = jnp.dot(h.astype(w2_ref.dtype), w2_ref[...],
                  preferred_element_type=jnp.float32)
    out = out + b2_ref[...]
    # Lane-dense (multiple-of-128) store -> unmasked vst.
    o_ref[...] = out.astype(o_ref.dtype)


def pad_params(w1, b1, w2, b2):
    """Pad weights/biases ONCE (outside the per-call path).

    K (= D_in) only needs sublane (8) alignment; N dims (hidden / output)
    are padded to lane width (128) so MXU feeds and stores are lane-dense.
    """
    d_in, hidden = w1.shape
    d_out = w2.shape[1]
    d_in_p = _round_up(d_in, SUBLANE)
    h_p = _round_up(hidden, LANE)
    d_out_p = _round_up(d_out, LANE)
    w1_p = jnp.zeros((d_in_p, h_p), w1.dtype).at[:d_in, :hidden].set(w1)
    b1_p = jnp.zeros((1, h_p), b1.dtype).at[:, :hidden].set(b1.reshape(1, hidden))
    w2_p = jnp.zeros((h_p, d_out_p), w2.dtype).at[:hidden, :d_out].set(w2)
    b2_p = jnp.zeros((1, d_out_p), b2.dtype).at[:, :d_out].set(b2.reshape(1, d_out))
    return w1_p, b1_p, w2_p, b2_p


@functools.partial(jax.jit, static_argnames=("out_dim", "tile_b", "use_bf16"))
def mlp_forward(x, w1_p, b1_p, w2_p, b2_p, *, out_dim, tile_b=512, use_bf16=False):
    """Fused fc1->ReLU->fc2.  Weights/biases must already be padded (pad_params)."""
    B, D_in = x.shape
    d_in_p, h_p = w1_p.shape
    d_out_p = w2_p.shape[1]

    if use_bf16:
        # Cast in the XLA wrapper (not in-kernel): v5e VPU has no bf16, and
        # MXU takes bf16 operands on all three generations. f32 accumulate
        # and f32 bias/ReLU epilogue are kept in the kernel.
        x = x.astype(jnp.bfloat16)
        w1_p = w1_p.astype(jnp.bfloat16)
        w2_p = w2_p.astype(jnp.bfloat16)

    # ---- Batch tile selection -------------------------------------------
    # Even split into 8-aligned tiles (minimal padding), capped by tile_b,
    # and >=2 tiles whenever B >= 16 so v7x's second TensorCore gets work.
    tb_cap = max(SUBLANE, (tile_b // SUBLANE) * SUBLANE)
    if B >= 2 * SUBLANE:
        tb_cap = min(tb_cap, _round_up(_cdiv(B, 2), SUBLANE))
    num_tiles = _cdiv(B, tb_cap)
    tb = _round_up(_cdiv(B, num_tiles), SUBLANE)
    b_p = tb * num_tiles

    # Pad x only if actually required (batch remainder or unaligned K).
    if (b_p, d_in_p) != (B, D_in):
        x = jnp.zeros((b_p, d_in_p), x.dtype).at[:B, :D_in].set(x)

    # ---- VMEM budget & cost hint ----------------------------------------
    in_itemsize = x.dtype.itemsize
    w_bytes = (w1_p.size * w1_p.dtype.itemsize + b1_p.size * b1_p.dtype.itemsize +
               w2_p.size * w2_p.dtype.itemsize + b2_p.size * b2_p.dtype.itemsize)
    vmem_bytes = 2 * (tb * d_in_p * in_itemsize + tb * d_out_p * 4) + 2 * w_bytes
    vmem_limit = int(min(max(2 * vmem_bytes, 32 << 20), 64 << 20))  # v7x: 64 MiB cap

    flops = 2 * b_p * d_in_p * h_p + 2 * b_p * h_p * d_out_p
    bytes_accessed = x.size * in_itemsize + w_bytes + b_p * d_out_p * 4

    out_p = pl.pallas_call(
        mlp_kernel,
        out_shape=jax.ShapeDtypeStruct((b_p, d_out_p), jnp.float32),
        grid=(num_tiles,),
        in_specs=[
            # Activations tiled along batch; full (unpadded) K in one block.
            pl.BlockSpec((tb, d_in_p), lambda i: (i, 0)),
            # Weights / biases: constant index map -> stay VMEM-resident.
            pl.BlockSpec((d_in_p, h_p), lambda i: (0, 0)),
            pl.BlockSpec((1, h_p), lambda i: (0, 0)),
            pl.BlockSpec((h_p, d_out_p), lambda i: (0, 0)),
            pl.BlockSpec((1, d_out_p), lambda i: (0, 0)),
        ],
        out_specs=pl.BlockSpec((tb, d_out_p), lambda i: (i, 0)),
        compiler_params=pltpu.CompilerParams(
            dimension_semantics=("parallel",),  # batch tiles shard across TCs on v7x
            vmem_limit_bytes=vmem_limit,
        ),
        cost_estimate=pl.CostEstimate(
            flops=flops, transcendentals=0, bytes_accessed=bytes_accessed
        ),
    )(x, w1_p, b1_p, w2_p, b2_p)

    # Strip batch / output-feature padding.
    return out_p[:B, :out_dim]


def init_params(key, input_dim, hidden_dim, output_dim):
    # Deterministic init mimicking nn.Linear's uniform(-1/sqrt(fan_in), 1/sqrt(fan_in)).
    k1, k2, k3, k4 = jax.random.split(key, 4)
    bound1 = 1.0 / (input_dim ** 0.5)
    bound2 = 1.0 / (hidden_dim ** 0.5)
    # Stored transposed relative to PyTorch (out,in) -> (in,out) for row-major matmul.
    w1 = jax.random.uniform(k1, (input_dim, hidden_dim), jnp.float32, -bound1, bound1)
    b1 = jax.random.uniform(k2, (1, hidden_dim), jnp.float32, -bound1, bound1)
    w2 = jax.random.uniform(k3, (hidden_dim, output_dim), jnp.float32, -bound2, bound2)
    b2 = jax.random.uniform(k4, (1, output_dim), jnp.float32, -bound2, bound2)
    return w1, b1, w2, b2


if __name__ == "__main__":
    input_dim = 28 * 28
    hidden_dim = 32
    output_dim = 10
    batch = 16  # small, but >=16 so the grid has 2 tiles (both v7x TCs busy)

    key = jax.random.PRNGKey(0)
    kx, kp = jax.random.split(key)
    x = jax.random.normal(kx, (batch, input_dim), jnp.float32)
    w1, b1, w2, b2 = init_params(kp, input_dim, hidden_dim, output_dim)

    # Pad weights ONCE, outside the per-call path.
    w1_p, b1_p, w2_p, b2_p = jax.block_until_ready(pad_params(w1, b1, w2, b2))

    out = mlp_forward(x, w1_p, b1_p, w2_p, b2_p, out_dim=output_dim)
    jax.block_until_ready(out)

    # Reference check in plain JAX (f32 default path -> tight tolerance holds).
    ref = jnp.maximum(x @ w1 + b1, 0.0) @ w2 + b2
    assert out.shape == (batch, output_dim), out.shape
    assert jnp.allclose(out, ref, atol=1e-5, rtol=1e-5)

    print("KERNEL_OK")
</pallas_src>

<mosaic_0001>
module attributes {stable_mosaic.version = 11 : i64} {
  func.func @mlp_kernel(%arg0: i32, %arg1: memref<8x784xf32, #tpu.memory_space<vmem>>, %arg2: memref<784x128xf32, #tpu.memory_space<vmem>>, %arg3: memref<1x128xf32, #tpu.memory_space<vmem>>, %arg4: memref<128x128xf32, #tpu.memory_space<vmem>>, %arg5: memref<1x128xf32, #tpu.memory_space<vmem>>, %arg6: memref<8x128xf32, #tpu.memory_space<vmem>>) attributes {dimension_semantics = [#tpu.dimension_semantics<parallel>], iteration_bounds = array<i64: 2>, scalar_prefetch = 0 : i64, scratch_operands = 0 : i64, tpu.core_type = #tpu.core_type<tc>, window_params = [{transform_indices = @transform_0, window_bounds = array<i64: 8, 784>}, {pipeline_mode = #tpu.pipeline_mode<synchronous>, transform_indices = @transform_1, window_bounds = array<i64: 784, 128>}, {pipeline_mode = #tpu.pipeline_mode<synchronous>, transform_indices = @transform_2, window_bounds = array<i64: 1, 128>}, {pipeline_mode = #tpu.pipeline_mode<synchronous>, transform_indices = @transform_3, window_bounds = array<i64: 128, 128>}, {pipeline_mode = #tpu.pipeline_mode<synchronous>, transform_indices = @transform_4, window_bounds = array<i64: 1, 128>}, {transform_indices = @transform_5, window_bounds = array<i64: 8, 128>}]} {
    %c0 = arith.constant 0 : index
    %c0_0 = arith.constant 0 : index
    %0 = vector.load %arg1[%c0, %c0_0] : memref<8x784xf32, #tpu.memory_space<vmem>>, vector<8x784xf32>
    %c0_1 = arith.constant 0 : index
    %c0_2 = arith.constant 0 : index
    %1 = vector.load %arg2[%c0_1, %c0_2] : memref<784x128xf32, #tpu.memory_space<vmem>>, vector<784x128xf32>
    %cst = arith.constant dense<0.000000e+00> : vector<8x128xf32>
    %2 = tpu.matmul %0, %1, %cst {dimension_numbers = #tpu.dot_dimension_numbers<[1], [0], [0], [1], [0, 0, 1, 1], [], []>} : vector<8x784xf32>, vector<784x128xf32>, vector<8x128xf32> -> vector<8x128xf32>
    %c0_3 = arith.constant 0 : index
    %c0_4 = arith.constant 0 : index
    %3 = vector.load %arg3[%c0_3, %c0_4] : memref<1x128xf32, #tpu.memory_space<vmem>>, vector<1x128xf32>
    %4 = vector.broadcast %3 : vector<1x128xf32> to vector<8x128xf32>
    %5 = arith.addf %2, %4 : vector<8x128xf32>
    %cst_5 = arith.constant 0.000000e+00 : f32
    %6 = vector.broadcast %cst_5 : f32 to vector<8x128xf32>
    %7 = arith.maximumf %5, %6 : vector<8x128xf32>
    %c0_6 = arith.constant 0 : index
    %c0_7 = arith.constant 0 : index
    %8 = vector.load %arg4[%c0_6, %c0_7] : memref<128x128xf32, #tpu.memory_space<vmem>>, vector<128x128xf32>
    %cst_8 = arith.constant dense<0.000000e+00> : vector<8x128xf32>
    %9 = tpu.matmul %7, %8, %cst_8 {dimension_numbers = #tpu.dot_dimension_numbers<[1], [0], [0], [1], [0, 0, 1, 1], [], []>} : vector<8x128xf32>, vector<128x128xf32>, vector<8x128xf32> -> vector<8x128xf32>
    %c0_9 = arith.constant 0 : index
    %c0_10 = arith.constant 0 : index
    %10 = vector.load %arg5[%c0_9, %c0_10] : memref<1x128xf32, #tpu.memory_space<vmem>>, vector<1x128xf32>
    %11 = vector.broadcast %10 : vector<1x128xf32> to vector<8x128xf32>
    %12 = arith.addf %9, %11 : vector<8x128xf32>
    %c0_11 = arith.constant 0 : index
    %c0_12 = arith.constant 0 : index
    %13 = vector.load %arg6[%c0_11, %c0_12] : memref<8x128xf32, #tpu.memory_space<vmem>>, vector<8x128xf32>
    tpu.vector_store %arg6[%c0_11, %c0_12], %12 {strides = array<i32>} : memref<8x128xf32, #tpu.memory_space<vmem>>, vector<8x128xf32>,
    return
  }
  func.func @transform_0(%arg0: i32) -> (i32, i32) {
    %c0_i32 = arith.constant 0 : i32
    %c0_i32_0 = arith.constant 0 : i32
    return %arg0, %c0_i32 : i32, i32
  }
  func.func @transform_1(%arg0: i32) -> (i32, i32) {
    %c0_i32 = arith.constant 0 : i32
    %c0_i32_0 = arith.constant 0 : i32
    %c0_i32_1 = arith.constant 0 : i32
    return %c0_i32, %c0_i32_0 : i32, i32
  }
  func.func @transform_2(%arg0: i32) -> (i32, i32) {
    %c0_i32 = arith.constant 0 : i32
    %c0_i32_0 = arith.constant 0 : i32
    %c0_i32_1 = arith.constant 0 : i32
    return %c0_i32, %c0_i32_0 : i32, i32
  }
  func.func @transform_3(%arg0: i32) -> (i32, i32) {
    %c0_i32 = arith.constant 0 : i32
    %c0_i32_0 = arith.constant 0 : i32
    %c0_i32_1 = arith.constant 0 : i32
    return %c0_i32, %c0_i32_0 : i32, i32
  }
  func.func @transform_4(%arg0: i32) -> (i32, i32) {
    %c0_i32 = arith.constant 0 : i32
    %c0_i32_0 = arith.constant 0 : i32
    %c0_i32_1 = arith.constant 0 : i32
    return %c0_i32, %c0_i32_0 : i32, i32
  }
  func.func @transform_5(%arg0: i32) -> (i32, i32) {
    %c0_i32 = arith.constant 0 : i32
    %c0_i32_0 = arith.constant 0 : i32
    return %arg0, %c0_i32 : i32, i32
  }
}

</mosaic_0001>

<llo_original>
// kernel: mlp_forward.1
$region0: #{mlp_forward.1}
  #allocation0 [shape = 'u32[]', space=smem, size = 0x4, offset = 0x4, fixed_abs, tag = 'smem constant byte address 0x4 - core index']
  #allocation1 [shape = 'u32[144,128]{1,0:T(1,128)}', space=vmem, size = 0x12000, scoped, tag = 'internal scratch']
  %s0 = inlined_call_operand.hbm [shape: f32[16,784], index: 0, kind: input, shape index: {}]
  %s1 = inlined_call_operand.hbm [shape: f32[784,128], index: 1, kind: input, shape index: {}]
  %s2 = inlined_call_operand.vmem [shape: f32[1,128], index: 2, kind: input, shape index: {}]
  %s3 = inlined_call_operand.hbm [shape: f32[128,128], index: 3, kind: input, shape index: {}]
  %s4 = inlined_call_operand.vmem [shape: f32[1,128], index: 4, kind: input, shape index: {}]
  %s5 = inlined_call_operand.hbm [shape: f32[16,128], index: 5, kind: output, shape index: {}]
  %s6 = sld [smem:[#allocation0]]
  $region65: #{mlp_forward.1} parent=0
    _
  %s8 = ssub.s32 1, %s6
  %s9 = scalar_select 0, %s8, %s6
  $region1: #{mlp_forward.1} parent=0
    #allocation2 [shape = 'u8[57344]{0}', space=vmem, size = 0xe000, scoped, tag = 'input window, operand 0']
    #allocation3 [shape = 's32[2]{0}', space=sflag, size = 0x8, scoped, tag = 'scoped memory for mlp_forward.1']
    #allocation4 [shape = 's32[2]{0}', space=sflag, size = 0x8, scoped, tag = 'scoped memory for mlp_forward.1']
    #allocation5 [shape = 'u8[401408]{0}', space=vmem, size = 0x62000, scoped, tag = 'input window, operand 1, single buffered']
    #allocation6 [shape = 's32[1]{0}', space=sflag, size = 0x4, scoped, tag = 'scoped memory for mlp_forward.1']
    #allocation7 [shape = 'u8[65536]{0}', space=vmem, size = 0x10000, scoped, tag = 'input window, operand 3, single buffered']
    #allocation8 [shape = 'u8[8192]{0}', space=vmem, size = 0x2000, scoped, tag = 'output window, operand 0']
    %10 = vsyncpa [#allocation3], 0
    %s11 = scalar_lea.sflag [#allocation3], 1
    %12 = vsyncpa %s11, 0
    %13 = vsyncpa [#allocation6], 0
    %14 = vsyncpa [#allocation4], 0
    %s15 = scalar_lea.sflag [#allocation4], 1
    %16 = vsyncpa %s15, 0
    loop: start=0, step=1, limit=4
    $region2: #{mlp_forward.1} parent=1 // loop_pre_header
      _
    $region3: #{mlp_forward.1} parent=1 // loop_header
      %s18 = sphi 0, %s22
      %p19 = scmp.ge.s32.totalorder %s18, 4
      %s28 = sphi 0, %s30
      %s31 = sphi 0, %s28
      %s32 = sphi 0, %s31
      %s48 = sphi 0, %s32
      %s52 = sphi 0, %s52
      %s54 = sphi 0, %s52
      %s55 = sphi 0, %s54
      %s69 = sphi 0, %s55
      %s73 = sphi 0, %s73
      %s75 = sphi 0, %s73
      %s76 = sphi 0, %s75
      %s90 = sphi 0, %s76
      %s94 = sphi 0, %s94
      %s96 = sphi 0, %s94
      %s97 = sphi 0, %s96
      %s111 = sphi 0, %s97
      %s115 = sphi 0, %s115
      %s117 = sphi 0, %s115
      %s118 = sphi 0, %s117
      %s132 = sphi 0, %s118
      %s138 = sphi 0, %s140
      %s141 = sphi 0, %s138
      %s142 = sphi 0, %s141
      %s158 = sphi 0, %s142
    $region4: #{mlp_forward.1} parent=1 // loop_header_branch
      %21 = sbr.rel (%p19) target = $region8
    $region5: #{mlp_forward.1} parent=1 // loop_body
      %s23 = ssub.s32 %s18, 1
      %s24 = ssub.s32 %s18, 2
      %s25 = sadd.s32 %s18, 1
      %s26 = ssub.s32 %s18, %s25
      %p27 = scmp.eq.s32.totalorder %s26, 0
      %s29 = sadd.s32 %s28, 1
      %s30 = scalar_select %p27, %s28, %s29
      %p33 = pneg %p27
      %p34 = scmp.eq.s32.totalorder %s18, 1
      %p35 = por %p33, %p34
      %p36 = scmp.ne.s32.totalorder %s28, %s31
      %p37 = scmp.eq.s32.totalorder %s18, 0
      %p38 = por %p36, %p37
      %p39 = scmp.ne.s32.totalorder %s28, %s31
      %p40 = scmp.eq.s32.totalorder %s23, 1
      %p41 = por %p39, %p40
      %p42 = scmp.ne.s32.totalorder %s31, %s32
      %p43 = scmp.eq.s32.totalorder %s23, 0
      %p44 = por %p42, %p43
      %p45 = scmp.ne.s32.totalorder %s31, %s32
      %p46 = scmp.eq.s32.totalorder %s24, 1
      %p47 = por %p45, %p46
      %p49 = scmp.ne.s32.totalorder %s32, %s48
      %p50 = scmp.eq.s32.totalorder %s24, 0
      %p51 = por %p49, %p50
      %s53 = sadd.s32 %s52, 1
      %p56 = scmp.eq.s32.totalorder %s18, 1
      %p57 = scmp.ne.s32.totalorder %s52, %s54
      %p58 = scmp.eq.s32.totalorder %s18, 0
      %p59 = por %p57, %p58
      %p60 = scmp.ne.s32.totalorder %s52, %s54
      %p61 = scmp.eq.s32.totalorder %s23, 1
      %p62 = por %p60, %p61
      %p63 = scmp.ne.s32.totalorder %s54, %s55
      %p64 = scmp.eq.s32.totalorder %s23, 0
      %p65 = por %p63, %p64
      %p66 = scmp.ne.s32.totalorder %s54, %s55
      %p67 = scmp.eq.s32.totalorder %s24, 1
      %p68 = por %p66, %p67
      %p70 = scmp.ne.s32.totalorder %s55, %s69
      %p71 = scmp.eq.s32.totalorder %s24, 0
      %p72 = por %p70, %p71
      %s74 = sadd.s32 %s73, 1
      %p77 = scmp.eq.s32.totalorder %s18, 1
      %p78 = scmp.ne.s32.totalorder %s73, %s75
      %p79 = scmp.eq.s32.totalorder %s18, 0
      %p80 = por %p78, %p79
      %p81 = scmp.ne.s32.totalorder %s73, %s75
      %p82 = scmp.eq.s32.totalorder %s23, 1
      %p83 = por %p81, %p82
      %p84 = scmp.ne.s32.totalorder %s75, %s76
      %p85 = scmp.eq.s32.totalorder %s23, 0
      %p86 = por %p84, %p85
      %p87 = scmp.ne.s32.totalorder %s75, %s76
      %p88 = scmp.eq.s32.totalorder %s24, 1
      %p89 = por %p87, %p88
      %p91 = scmp.ne.s32.totalorder %s76, %s90
      %p92 = scmp.eq.s32.totalorder %s24, 0
      %p93 = por %p91, %p92
      %s95 = sadd.s32 %s94, 1
      %p98 = scmp.eq.s32.totalorder %s18, 1
      %p99 = scmp.ne.s32.totalorder %s94, %s96
      %p100 = scmp.eq.s32.totalorder %s18, 0
      %p101 = por %p99, %p100
      %p102 = scmp.ne.s32.totalorder %s94, %s96
      %p103 = scmp.eq.s32.totalorder %s23, 1
      %p104 = por %p102, %p103
      %p105 = scmp.ne.s32.totalorder %s96, %s97
      %p106 = scmp.eq.s32.totalorder %s23, 0
      %p107 = por %p105, %p106
      %p108 = scmp.ne.s32.totalorder %s96, %s97
      %p109 = scmp.eq.s32.totalorder %s24, 1
      %p110 = por %p108, %p109
      %p112 = scmp.ne.s32.totalorder %s97, %s111
      %p113 = scmp.eq.s32.totalorder %s24, 0
      %p114 = por %p112, %p113
      %s116 = sadd.s32 %s115, 1
      %p119 = scmp.eq.s32.totalorder %s18, 1
      %p120 = scmp.ne.s32.totalorder %s115, %s117
      %p121 = scmp.eq.s32.totalorder %s18, 0
      %p122 = por %p120, %p121
      %p123 = scmp.ne.s32.totalorder %s115, %s117
      %p124 = scmp.eq.s32.totalorder %s23, 1
      %p125 = por %p123, %p124
      %p126 = scmp.ne.s32.totalorder %s117, %s118
      %p127 = scmp.eq.s32.totalorder %s23, 0
      %p128 = por %p126, %p127
      %p129 = scmp.ne.s32.totalorder %s117, %s118
      %p130 = scmp.eq.s32.totalorder %s24, 1
      %p131 = por %p129, %p130
      %p133 = scmp.ne.s32.totalorder %s118, %s132
      %p134 = scmp.eq.s32.totalorder %s24, 0
      %p135 = por %p133, %p134
      %s136 = ssub.s32 %s18, %s25
      %p137 = scmp.eq.s32.totalorder %s136, 0
      %s139 = sadd.s32 %s138, 1
      %s140 = scalar_select %p137, %s138, %s139
      %p143 = pneg %p137
      %p144 = scmp.eq.s32.totalorder %s18, 1
      %p145 = por %p143, %p144
      %p146 = scmp.ne.s32.totalorder %s138, %s141
      %p147 = scmp.eq.s32.totalorder %s18, 0
      %p148 = por %p146, %p147
      %p149 = scmp.ne.s32.totalorder %s138, %s141
      %p150 = scmp.eq.s32.totalorder %s23, 1
      %p151 = por %p149, %p150
      %p152 = scmp.ne.s32.totalorder %s141, %s142
      %p153 = scmp.eq.s32.totalorder %s23, 0
      %p154 = por %p152, %p153
      %p155 = scmp.ne.s32.totalorder %s141, %s142
      %p156 = scmp.eq.s32.totalorder %s24, 1
      %p157 = por %p155, %p156
      %p159 = scmp.ne.s32.totalorder %s142, %s158
      %p160 = scmp.eq.s32.totalorder %s24, 0
      %p161 = por %p159, %p160
      %p162 = scmp.le.s32.totalorder 1, %s18
      %p163 = scmp.lt.s32.totalorder %s18, 3
      %p164 = pnand %p162, %p163
      %p165 = pneg %p164
      // Predicated region
      $region9: #{mlp_forward.1} parent=5 // pred_check
        _
      $region10: #{mlp_forward.1} parent=5 // pred_check_branch
        %167 = sbr.rel (%p164) target = $region12
      $region11: #{mlp_forward.1} parent=5 // pred_region
        %s168 = ssub.s32 %s18, 1
        // Predicated region
        $region13: #{mlp_forward.1} parent=11 // pred_check
          %p169 = pneg %p65
        $region14: #{mlp_forward.1} parent=11 // pred_check_branch
          %171 = sbr.rel (%p169) target = $region16
        $region15: #{mlp_forward.1} parent=11 // pred_region
          %s173 = ssub.s32 12544, 12544
          %174 = vsyncadd [#allocation6], %s173
          %s175 = sshll.u32 [#allocation5], 4
          %s176 = int_to_ptr.vmem [resolvable:$true] %s175
          %181 = dma.hbm_to_vmem [thread:$0]  %s1, 12544, %s176, [#allocation6], 128, 128, 8
        $region16: #{mlp_forward.1} parent=11 // pred_fallthru
          _
        // Predicated region
        $region17: #{mlp_forward.1} parent=11 // pred_check
          %p182 = pneg %p86
        $region18: #{mlp_forward.1} parent=11 // pred_check_branch
          %184 = sbr.rel (%p182) target = $region20
        $region19: #{mlp_forward.1} parent=11 // pred_region
          _
        $region20: #{mlp_forward.1} parent=11 // pred_fallthru
          _
        // Predicated region
        $region21: #{mlp_forward.1} parent=11 // pred_check
          %p185 = pneg %p107
        $region22: #{mlp_forward.1} parent=11 // pred_check_branch
          %187 = sbr.rel (%p185) target = $region24
        $region23: #{mlp_forward.1} parent=11 // pred_region
          %s189 = ssub.s32 2048, 2048
          %190 = vsyncadd [#allocation6], %s189
          %s191 = sshll.u32 [#allocation7], 4
          %s192 = int_to_ptr.vmem [resolvable:$true] %s191
          %197 = dma.hbm_to_vmem [thread:$0]  %s3, 2048, %s192, [#allocation6], 128, 128, 8
        $region24: #{mlp_forward.1} parent=11 // pred_fallthru
          _
        // Predicated region
        $region25: #{mlp_forward.1} parent=11 // pred_check
          %p198 = pneg %p128
        $region26: #{mlp_forward.1} parent=11 // pred_check_branch
          %200 = sbr.rel (%p198) target = $region28
        $region27: #{mlp_forward.1} parent=11 // pred_region
          _
        $region28: #{mlp_forward.1} parent=11 // pred_fallthru
          _
      $region12: #{mlp_forward.1} parent=5 // pred_fallthru
        _
      %p201 = scmp.lt.s32.totalorder %s18, 2
      // Predicated region
      $region29: #{mlp_forward.1} parent=5 // pred_check
        %p202 = pneg %p201
      $region30: #{mlp_forward.1} parent=5 // pred_check_branch
        %204 = sbr.rel (%p202) target = $region32
      $region31: #{mlp_forward.1} parent=5 // pred_region
        // Predicated region
        $region33: #{mlp_forward.1} parent=31 // pred_check
          %p205 = pneg %p38
        $region34: #{mlp_forward.1} parent=31 // pred_check_branch
          %207 = sbr.rel (%p205) target = $region36
        $region35: #{mlp_forward.1} parent=31 // pred_region
          %s208 = sand.u32 %s28, 1
          %s209 = scalar_lea.sflag [#allocation3], %s208
          %s210 = sand.u32 %s28, 1
          %s211 = smul.addr %s210, 56
          %s212 = scalar_lea.vmem [#allocation2], %s211
          %s214 = ssub.s32 896, 896
          %215 = vsyncadd %s209, %s214
          %s216 = smul.addr %s18, 7
          %s217 = smul.addr %s216, 128
          %s218 = scalar_lea.hbm %s0, %s217
          %s220 = sshll.u32 %s212, 4
          %s221 = int_to_ptr.vmem [resolvable:$true] %s220
          %223 = dma.hbm_to_vmem [thread:$0]  %s218, 896, %s221, %s209
        $region36: #{mlp_forward.1} parent=31 // pred_fallthru
          _
      $region32: #{mlp_forward.1} parent=5 // pred_fallthru
        _
      %p224 = scmp.le.s32.totalorder 1, %s18
      %p225 = scmp.lt.s32.totalorder %s18, 3
      %p226 = pnand %p224, %p225
      %p227 = pneg %p226
      // Predicated region
      $region37: #{mlp_forward.1} parent=5 // pred_check
        _
      $region38: #{mlp_forward.1} parent=5 // pred_check_branch
        %229 = sbr.rel (%p226) target = $region40
      $region39: #{mlp_forward.1} parent=5 // pred_region
        %s230 = ssub.s32 %s18, 1
        %s231 = sand.u32 %s31, 1
        %s232 = scalar_lea.sflag [#allocation3], %s231
        %s233 = sand.u32 %s31, 1
        %s234 = smul.addr %s233, 56
        %s235 = scalar_lea.vmem [#allocation2], %s234
        // Predicated region
        $region41: #{mlp_forward.1} parent=39 // pred_check
          %p236 = pneg %p44
        $region42: #{mlp_forward.1} parent=39 // pred_check_branch
          %238 = sbr.rel (%p236) target = $region44
        $region43: #{mlp_forward.1} parent=39 // pred_region
          %239 = dma.done %s232, 896
        $region44: #{mlp_forward.1} parent=39 // pred_fallthru
          _
        // Predicated region
        $region45: #{mlp_forward.1} parent=39 // pred_check
          %p240 = pneg %p65
        $region46: #{mlp_forward.1} parent=39 // pred_check_branch
          %242 = sbr.rel (%p240) target = $region48
        $region47: #{mlp_forward.1} parent=39 // pred_region
          %243 = dma.done [#allocation6], 12544
        $region48: #{mlp_forward.1} parent=39 // pred_fallthru
          _
        // Predicated region
        $region49: #{mlp_forward.1} parent=39 // pred_check
          %p244 = pneg %p107
        $region50: #{mlp_forward.1} parent=39 // pred_check_branch
          %246 = sbr.rel (%p244) target = $region52
        $region51: #{mlp_forward.1} parent=39 // pred_region
          %247 = dma.done [#allocation6], 2048
        $region52: #{mlp_forward.1} parent=39 // pred_fallthru
          _
        %s248 = sand.u32 %s31, 1
        %s249 = scalar_lea.sflag [#allocation3], %s248
        %s250 = sand.u32 %s31, 1
        %s251 = smul.addr %s250, 56
        %s252 = scalar_lea.vmem [#allocation2], %s251
        %p253 = pneg %p44
        %p254 = pneg %p41
        %p255 = pneg %p65
        %p256 = pneg %p62
        %p257 = pneg %p86
        %p258 = pneg %p83
        %p259 = pneg %p107
        %p260 = pneg %p104
        %p261 = pneg %p128
        %p262 = pneg %p125
        %p263 = pneg %p154
        %p264 = pneg %p151
        %s265 = sand.u32 %s141, 1
        %s266 = scalar_lea.sflag [#allocation4], %s265
        %s267 = sand.u32 %s141, 1
        %s268 = smul.addr %s267, 8
        %s269 = scalar_lea.vmem [#allocation8], %s268
        %v270 = vld [vmem:[%s235] sm:$0xff]
        %v271 = vld [vmem:[%s235 + $0x8] sm:$0xff]
        %v272 = vld [vmem:[%s235 + $0x10] sm:$0xff]
        %v273 = vld [vmem:[%s235 + $0x18] sm:$0xff]
        %v274 = vld [vmem:[%s235 + $0x20] sm:$0xff]
        %v275 = vld [vmem:[%s235 + $0x28] sm:$0xff]
        %v276 = vld [vmem:[%s235 + $0x30] sm:$0xff]
        %v277 = vld [vmem:[#allocation5] sm:$0xff]
        %v278 = vld [vmem:[#allocation5 + $0x8] sm:$0xff]
        %v279 = vld [vmem:[#allocation5 + $0x10] sm:$0xff]
        %v280 = vld [vmem:[#allocation5 + $0x18] sm:$0xff]
        %v281 = vld [vmem:[#allocation5 + $0x20] sm:$0xff]
        %v282 = vld [vmem:[#allocation5 + $0x28] sm:$0xff]
        %v283 = vld [vmem:[#allocation5 + $0x30] sm:$0xff]
        %v284 = vld [vmem:[#allocation5 + $0x38] sm:$0xff]
        %v285 = vld [vmem:[#allocation5 + $0x40] sm:$0xff]
        %v286 = vld [vmem:[#allocation5 + $0x48] sm:$0xff]
        %v287 = vld [vmem:[#allocation5 + $0x50] sm:$0xff]
        %v288 = vld [vmem:[#allocation5 + $0x58] sm:$0xff]
        %v289 = vld [vmem:[#allocation5 + $0x60] sm:$0xff]
        %v290 = vld [vmem:[#allocation5 + $0x68] sm:$0xff]
        %v291 = vld [vmem:[#allocation5 + $0x70] sm:$0xff]
        %v292 = vld [vmem:[#allocation5 + $0x78] sm:$0xff]
        %v293 = vld [vmem:[#allocation5 + $0x80] sm:$0xff]
        %v294 = vld [vmem:[#allocation5 + $0x88] sm:$0xff]
        %v295 = vld [vmem:[#allocation5 + $0x90] sm:$0xff]
        %v296 = vld [vmem:[#allocation5 + $0x98] sm:$0xff]
        %v297 = vld [vmem:[#allocation5 + $0xa0] sm:$0xff]
        %v298 = vld [vmem:[#allocation5 + $0xa8] sm:$0xff]
        %v299 = vld [vmem:[#allocation5 + $0xb0] sm:$0xff]
        %v300 = vld [vmem:[#allocation5 + $0xb8] sm:$0xff]
        %v301 = vld [vmem:[#allocation5 + $0xc0] sm:$0xff]
        %v302 = vld [vmem:[#allocation5 + $0xc8] sm:$0xff]
        %v303 = vld [vmem:[#allocation5 + $0xd0] sm:$0xff]
        %v304 = vld [vmem:[#allocation5 + $0xd8] sm:$0xff]
        %v305 = vld [vmem:[#allocation5 + $0xe0] sm:$0xff]
        %v306 = vld [vmem:[#allocation5 + $0xe8] sm:$0xff]
        %v307 = vld [vmem:[#allocation5 + $0xf0] sm:$0xff]
        %v308 = vld [vmem:[#allocation5 + $0xf8] sm:$0xff]
        %v309 = vld [vmem:[#allocation5 + $0x100] sm:$0xff]
        %v310 = vld [vmem:[#allocation5 + $0x108] sm:$0xff]
        %v311 = vld [vmem:[#allocation5 + $0x110] sm:$0xff]
        %v312 = vld [vmem:[#allocation5 + $0x118] sm:$0xff]
        %v313 = vld [vmem:[#allocation5 + $0x120] sm:$0xff]
        %v314 = vld [vmem:[#allocation5 + $0x128] sm:$0xff]
        %v315 = vld [vmem:[#allocation5 + $0x130] sm:$0xff]
        %v316 = vld [vmem:[#allocation5 + $0x138] sm:$0xff]
        %v317 = vld [vmem:[#allocation5 + $0x140] sm:$0xff]
        %v318 = vld [vmem:[#allocation5 + $0x148] sm:$0xff]
        %v319 = vld [vmem:[#allocation5 + $0x150] sm:$0xff]
        %v320 = vld [vmem:[#allocation5 + $0x158] sm:$0xff]
        %v321 = vld [vmem:[#allocation5 + $0x160] sm:$0xff]
        %v322 = vld [vmem:[#allocation5 + $0x168] sm:$0xff]
        %v323 = vld [vmem:[#allocation5 + $0x170] sm:$0xff]
        %v324 = vld [vmem:[#allocation5 + $0x178] sm:$0xff]
        %v325 = vld [vmem:[#allocation5 + $0x180] sm:$0xff]
        %v326 = vld [vmem:[#allocation5 + $0x188] sm:$0xff]
        %v327 = vld [vmem:[#allocation5 + $0x190] sm:$0xff]
        %v328 = vld [vmem:[#allocation5 + $0x198] sm:$0xff]
        %v329 = vld [vmem:[#allocation5 + $0x1a0] sm:$0xff]
        %v330 = vld [vmem:[#allocation5 + $0x1a8] sm:$0xff]
        %v331 = vld [vmem:[#allocation5 + $0x1b0] sm:$0xff]
        %v332 = vld [vmem:[#allocation5 + $0x1b8] sm:$0xff]
        %v333 = vld [vmem:[#allocation5 + $0x1c0] sm:$0xff]
        %v334 = vld [vmem:[#allocation5 + $0x1c8] sm:$0xff]
        %v335 = vld [vmem:[#allocation5 + $0x1d0] sm:$0xff]
        %v336 = vld [vmem:[#allocation5 + $0x1d8] sm:$0xff]
        %v337 = vld [vmem:[#allocation5 + $0x1e0] sm:$0xff]
        %v338 = vld [vmem:[#allocation5 + $0x1e8] sm:$0xff]
        %v339 = vld [vmem:[#allocation5 + $0x1f0] sm:$0xff]
        %v340 = vld [vmem:[#allocation5 + $0x1f8] sm:$0xff]
        %v341 = vld [vmem:[#allocation5 + $0x200] sm:$0xff]
        %v342 = vld [vmem:[#allocation5 + $0x208] sm:$0xff]
        %v343 = vld [vmem:[#allocation5 + $0x210] sm:$0xff]
        %v344 = vld [vmem:[#allocation5 + $0x218] sm:$0xff]
        %v345 = vld [vmem:[#allocation5 + $0x220] sm:$0xff]
        %v346 = vld [vmem:[#allocation5 + $0x228] sm:$0xff]
        %v347 = vld [vmem:[#allocation5 + $0x230] sm:$0xff]
        %v348 = vld [vmem:[#allocation5 + $0x238] sm:$0xff]
        %v349 = vld [vmem:[#allocation5 + $0x240] sm:$0xff]
        %v350 = vld [vmem:[#allocation5 + $0x248] sm:$0xff]
        %v351 = vld [vmem:[#allocation5 + $0x250] sm:$0xff]
        %v352 = vld [vmem:[#allocation5 + $0x258] sm:$0xff]
        %v353 = vld [vmem:[#allocation5 + $0x260] sm:$0xff]
        %v354 = vld [vmem:[#allocation5 + $0x268] sm:$0xff]
        %v355 = vld [vmem:[#allocation5 + $0x270] sm:$0xff]
        %v356 = vld [vmem:[#allocation5 + $0x278] sm:$0xff]
        %v357 = vld [vmem:[#allocation5 + $0x280] sm:$0xff]
        %v358 = vld [vmem:[#allocation5 + $0x288] sm:$0xff]
        %v359 = vld [vmem:[#allocation5 + $0x290] sm:$0xff]
        %v360 = vld [vmem:[#allocation5 + $0x298] sm:$0xff]
        %v361 = vld [vmem:[#allocation5 + $0x2a0] sm:$0xff]
        %v362 = vld [vmem:[#allocation5 + $0x2a8] sm:$0xff]
        %v363 = vld [vmem:[#allocation5 + $0x2b0] sm:$0xff]
        %v364 = vld [vmem:[#allocation5 + $0x2b8] sm:$0xff]
        %v365 = vld [vmem:[#allocation5 + $0x2c0] sm:$0xff]
        %v366 = vld [vmem:[#allocation5 + $0x2c8] sm:$0xff]
        %v367 = vld [vmem:[#allocation5 + $0x2d0] sm:$0xff]
        %v368 = vld [vmem:[#allocation5 + $0x2d8] sm:$0xff]
        %v369 = vld [vmem:[#allocation5 + $0x2e0] sm:$0xff]
        %v370 = vld [vmem:[#allocation5 + $0x2e8] sm:$0xff]
        %v371 = vld [vmem:[#allocation5 + $0x2f0] sm:$0xff]
        %v372 = vld [vmem:[#allocation5 + $0x2f8] sm:$0xff]
        %v373 = vld [vmem:[#allocation5 + $0x300] sm:$0xff]
        %v374 = vld [vmem:[#allocation5 + $0x308] sm:$0xff]
        %v375 = vld [vmem:[%s2] sm:$0x1]
        %v377 = vlaneseq
        %v378 = vshrl.u32 %v377, 7
        %v379 = vsub.s32 0, %v378
        %v380 = vrot.slane %v375, %v379
        %vm382 = vcmask 130048
        %v384 = vsel %vm382, %v276, 0
        %386 = vmatprep.subr.mxu0 0.0
        %387 = vmatpush1.msra.mxu0 %v292
        %388 = vmatprep.subr.mxu0 0.0
        %389 = vmatpush1.msra.mxu0 %v291
        %390 = vmatprep.subr.mxu0 0.0
        %391 = vmatpush1.msra.mxu0 %v290
        %392 = vmatprep.subr.mxu0 0.0
        %393 = vmatpush1.msra.mxu0 %v289
        %394 = vmatprep.subr.mxu0 0.0
        %395 = vmatpush1.msra.mxu0 %v288
        %396 = vmatprep.subr.mxu0 0.0
        %397 = vmatpush1.msra.mxu0 %v287
        %398 = vmatprep.subr.mxu0 0.0
        %399 = vmatpush1.msra.mxu0 %v286
        %400 = vmatprep.subr.mxu0 0.0
        %401 = vmatpush1.msra.mxu0 %v285
        %402 = vmatprep.subr.mxu0 0.0
        %403 = vmatpush1.msra.mxu0 %v284
        %404 = vmatprep.subr.mxu0 0.0
        %405 = vmatpush1.msra.mxu0 %v283
        %406 = vmatprep.subr.mxu0 0.0
        %407 = vmatpush1.msra.mxu0 %v282
        %408 = vmatprep.subr.mxu0 0.0
        %409 = vmatpush1.msra.mxu0 %v281
        %410 = vmatprep.subr.mxu0 0.0
        %411 = vmatpush1.msra.mxu0 %v280
        %412 = vmatprep.subr.mxu0 0.0
        %413 = vmatpush1.msra.mxu0 %v279
        %414 = vmatprep.subr.mxu0 0.0
        %415 = vmatpush1.msra.mxu0 %v278
        %416 = vmatprep.subr.mxu0 0.0
        %417 = vmatpush1.msra.mxu0 %v277
        %418 = vmatprep.subr.mxu0 0.0
        %419 = vmatpush2.msra.mxu0 %v308
        %420 = vmatprep.subr.mxu0 0.0
        %421 = vmatpush2.msra.mxu0 %v307
        %422 = vmatprep.subr.mxu0 0.0
        %423 = vmatpush2.msra.mxu0 %v306
        %424 = vmatprep.subr.mxu0 0.0
        %425 = vmatpush2.msra.mxu0 %v305
        %426 = vmatprep.subr.mxu0 0.0
        %427 = vmatpush2.msra.mxu0 %v304
        %428 = vmatprep.subr.mxu0 0.0
        %429 = vmatpush2.msra.mxu0 %v303
        %430 = vmatprep.subr.mxu0 0.0
        %431 = vmatpush2.msra.mxu0 %v302
        %432 = vmatprep.subr.mxu0 0.0
        %433 = vmatpush2.msra.mxu0 %v301
        %434 = vmatprep.subr.mxu0 0.0
        %435 = vmatpush2.msra.mxu0 %v300
        %436 = vmatprep.subr.mxu0 0.0
        %437 = vmatpush2.msra.mxu0 %v299
        %438 = vmatprep.subr.mxu0 0.0
        %439 = vmatpush2.msra.mxu0 %v298
        %440 = vmatprep.subr.mxu0 0.0
        %441 = vmatpush2.msra.mxu0 %v297
        %442 = vmatprep.subr.mxu0 0.0
        %443 = vmatpush2.msra.mxu0 %v296
        %444 = vmatprep.subr.mxu0 0.0
        %445 = vmatpush2.msra.mxu0 %v295
        %446 = vmatprep.subr.mxu0 0.0
        %447 = vmatpush2.msra.mxu0 %v294
        %448 = vmatprep.subr.mxu0 0.0
        %449 = vmatpush2.msra.mxu0 %v293
        %450 = vmatprep.mubr.f32.mxu0 %v271
        %451 = vmatmul.mubr.f32.gmra.mxu0 %v270
        %v452 = vpop.f32.mrf.mxu0
        %v453 = vadd.f32 %v380, %v452
        %v454 = vpop.f32.mrf.mxu0
        %455 = vdwg.mxu0
        %456 = vmatprep.subr.mxu0 0.0
        %457 = vmatpush1.msra.mxu0 %v324
        %458 = vmatprep.subr.mxu0 0.0
        %459 = vmatpush1.msra.mxu0 %v323
        %460 = vmatprep.subr.mxu0 0.0
        %461 = vmatpush1.msra.mxu0 %v322
        %462 = vmatprep.subr.mxu0 0.0
        %463 = vmatpush1.msra.mxu0 %v321
        %464 = vmatprep.subr.mxu0 0.0
        %465 = vmatpush1.msra.mxu0 %v320
        %466 = vmatprep.subr.mxu0 0.0
        %467 = vmatpush1.msra.mxu0 %v319
        %468 = vmatprep.subr.mxu0 0.0
        %469 = vmatpush1.msra.mxu0 %v318
        %470 = vmatprep.subr.mxu0 0.0
        %471 = vmatpush1.msra.mxu0 %v317
        %472 = vmatprep.subr.mxu0 0.0
        %473 = vmatpush1.msra.mxu0 %v316
        %474 = vmatprep.subr.mxu0 0.0
        %475 = vmatpush1.msra.mxu0 %v315
        %476 = vmatprep.subr.mxu0 0.0
        %477 = vmatpush1.msra.mxu0 %v314
        %478 = vmatprep.subr.mxu0 0.0
        %479 = vmatpush1.msra.mxu0 %v313
        %480 = vmatprep.subr.mxu0 0.0
        %481 = vmatpush1.msra.mxu0 %v312
        %482 = vmatprep.subr.mxu0 0.0
        %483 = vmatpush1.msra.mxu0 %v311
        %484 = vmatprep.subr.mxu0 0.0
        %485 = vmatpush1.msra.mxu0 %v310
        %486 = vmatprep.subr.mxu0 0.0
        %487 = vmatpush1.msra.mxu0 %v309
        %488 = vmatprep.subr.mxu0 0.0
        %489 = vmatpush2.msra.mxu0 %v340
        %490 = vmatprep.subr.mxu0 0.0
        %491 = vmatpush2.msra.mxu0 %v339
        %492 = vmatprep.subr.mxu0 0.0
        %493 = vmatpush2.msra.mxu0 %v338
        %494 = vmatprep.subr.mxu0 0.0
        %495 = vmatpush2.msra.mxu0 %v337
        %496 = vmatprep.subr.mxu0 0.0
        %497 = vmatpush2.msra.mxu0 %v336
        %498 = vmatprep.subr.mxu0 0.0
        %499 = vmatpush2.msra.mxu0 %v335
        %500 = vmatprep.subr.mxu0 0.0
        %501 = vmatpush2.msra.mxu0 %v334
        %502 = vmatprep.subr.mxu0 0.0
        %503 = vmatpush2.msra.mxu0 %v333
        %504 = vmatprep.subr.mxu0 0.0
        %505 = vmatpush2.msra.mxu0 %v332
        %506 = vmatprep.subr.mxu0 0.0
        %507 = vmatpush2.msra.mxu0 %v331
        %508 = vmatprep.subr.mxu0 0.0
        %509 = vmatpush2.msra.mxu0 %v330
        %510 = vmatprep.subr.mxu0 0.0
        %511 = vmatpush2.msra.mxu0 %v329
        %512 = vmatprep.subr.mxu0 0.0
        %513 = vmatpush2.msra.mxu0 %v328
        %514 = vmatprep.subr.mxu0 0.0
        %515 = vmatpush2.msra.mxu0 %v327
        %516 = vmatprep.subr.mxu0 0.0
        %517 = vmatpush2.msra.mxu0 %v326
        %518 = vmatprep.subr.mxu0 0.0
        %519 = vmatpush2.msra.mxu0 %v325
        %520 = vmatprep.mubr.f32.mxu0 %v273
        %521 = vmatmul.mubr.f32.gmra.mxu0 %v272
        %v522 = vpop.f32.mrf.mxu0
        %v523 = vadd.f32 %v453, %v522
        %v524 = vpop.f32.mrf.mxu0
        %525 = vdwg.mxu0
        %526 = vmatprep.subr.mxu0 0.0
        %527 = vmatpush1.msra.mxu0 %v356
        %528 = vmatprep.subr.mxu0 0.0
        %529 = vmatpush1.msra.mxu0 %v355
        %530 = vmatprep.subr.mxu0 0.0
        %531 = vmatpush1.msra.mxu0 %v354
        %532 = vmatprep.subr.mxu0 0.0
        %533 = vmatpush1.msra.mxu0 %v353
        %534 = vmatprep.subr.mxu0 0.0
        %535 = vmatpush1.msra.mxu0 %v352
        %536 = vmatprep.subr.mxu0 0.0
        %537 = vmatpush1.msra.mxu0 %v351
        %538 = vmatprep.subr.mxu0 0.0
        %539 = vmatpush1.msra.mxu0 %v350
        %540 = vmatprep.subr.mxu0 0.0
        %541 = vmatpush1.msra.mxu0 %v349
        %542 = vmatprep.subr.mxu0 0.0
        %543 = vmatpush1.msra.mxu0 %v348
        %544 = vmatprep.subr.mxu0 0.0
        %545 = vmatpush1.msra.mxu0 %v347
        %546 = vmatprep.subr.mxu0 0.0
        %547 = vmatpush1.msra.mxu0 %v346
        %548 = vmatprep.subr.mxu0 0.0
        %549 = vmatpush1.msra.mxu0 %v345
        %550 = vmatprep.subr.mxu0 0.0
        %551 = vmatpush1.msra.mxu0 %v344
        %552 = vmatprep.subr.mxu0 0.0
        %553 = vmatpush1.msra.mxu0 %v343
        %554 = vmatprep.subr.mxu0 0.0
        %555 = vmatpush1.msra.mxu0 %v342
        %556 = vmatprep.subr.mxu0 0.0
        %557 = vmatpush1.msra.mxu0 %v341
        %558 = vmatprep.subr.mxu0 0.0
        %559 = vmatpush2.msra.mxu0 %v372
        %560 = vmatprep.subr.mxu0 0.0
        %561 = vmatpush2.msra.mxu0 %v371
        %562 = vmatprep.subr.mxu0 0.0
        %563 = vmatpush2.msra.mxu0 %v370
        %564 = vmatprep.subr.mxu0 0.0
        %565 = vmatpush2.msra.mxu0 %v369
        %566 = vmatprep.subr.mxu0 0.0
        %567 = vmatpush2.msra.mxu0 %v368
        %568 = vmatprep.subr.mxu0 0.0
        %569 = vmatpush2.msra.mxu0 %v367
        %570 = vmatprep.subr.mxu0 0.0
        %571 = vmatpush2.msra.mxu0 %v366
        %572 = vmatprep.subr.mxu0 0.0
        %573 = vmatpush2.msra.mxu0 %v365
        %574 = vmatprep.subr.mxu0 0.0
        %575 = vmatpush2.msra.mxu0 %v364
        %576 = vmatprep.subr.mxu0 0.0
        %577 = vmatpush2.msra.mxu0 %v363
        %578 = vmatprep.subr.mxu0 0.0
        %579 = vmatpush2.msra.mxu0 %v362
        %580 = vmatprep.subr.mxu0 0.0
        %581 = vmatpush2.msra.mxu0 %v361
        %582 = vmatprep.subr.mxu0 0.0
        %583 = vmatpush2.msra.mxu0 %v360
        %584 = vmatprep.subr.mxu0 0.0
        %585 = vmatpush2.msra.mxu0 %v359
        %586 = vmatprep.subr.mxu0 0.0
        %587 = vmatpush2.msra.mxu0 %v358
        %588 = vmatprep.subr.mxu0 0.0
        %589 = vmatpush2.msra.mxu0 %v357
        %590 = vmatprep.mubr.f32.mxu0 %v275
        %591 = vmatmul.mubr.f32.gmra.mxu0 %v274
        %v592 = vpop.f32.mrf.mxu0
        %v593 = vadd.f32 %v523, %v592
        %v594 = vpop.f32.mrf.mxu0
        %595 = vdwg.mxu0
        %596 = vmatprep.subr.mxu0 0.0
        %597 = vmatpush1.msra.mxu0 0.0
        %598 = vmatprep.subr.mxu0 0.0
        %599 = vmatpush1.msra.mxu0 0.0
        %600 = vmatprep.subr.mxu0 0.0
        %601 = vmatpush1.msra.mxu0 0.0
        %602 = vmatprep.subr.mxu0 0.0
        %603 = vmatpush1.msra.mxu0 0.0
        %604 = vmatprep.subr.mxu0 0.0
        %605 = vmatpush1.msra.mxu0 0.0
        %606 = vmatprep.subr.mxu0 0.0
        %607 = vmatpush1.msra.mxu0 0.0
        %608 = vmatprep.subr.mxu0 0.0
        %609 = vmatpush1.msra.mxu0 0.0
        %610 = vmatprep.subr.mxu0 0.0
        %611 = vmatpush1.msra.mxu0 0.0
        %612 = vmatprep.subr.mxu0 0.0
        %613 = vmatpush1.msra.mxu0 0.0
        %614 = vmatprep.subr.mxu0 0.0
        %615 = vmatpush1.msra.mxu0 0.0
        %616 = vmatprep.subr.mxu0 0.0
        %617 = vmatpush1.msra.mxu0 0.0
        %618 = vmatprep.subr.mxu0 0.0
        %619 = vmatpush1.msra.mxu0 0.0
        %620 = vmatprep.subr.mxu0 0.0
        %621 = vmatpush1.msra.mxu0 0.0
        %622 = vmatprep.subr.mxu0 0.0
        %623 = vmatpush1.msra.mxu0 0.0
        %624 = vmatprep.subr.mxu0 0.0
        %625 = vmatpush1.msra.mxu0 %v374
        %626 = vmatprep.subr.mxu0 0.0
        %627 = vmatpush1.msra.mxu0 %v373
        %628 = vmatprep.subr.mxu0 0.0
        %629 = vmatpush2.msra.mxu0 0.0
        %630 = vmatprep.subr.mxu0 0.0
        %631 = vmatpush2.msra.mxu0 0.0
        %632 = vmatprep.subr.mxu0 0.0
        %633 = vmatpush2.msra.mxu0 0.0
        %634 = vmatprep.subr.mxu0 0.0
        %635 = vmatpush2.msra.mxu0 0.0
        %636 = vmatprep.subr.mxu0 0.0
        %637 = vmatpush2.msra.mxu0 0.0
        %638 = vmatprep.subr.mxu0 0.0
        %639 = vmatpush2.msra.mxu0 0.0
        %640 = vmatprep.subr.mxu0 0.0
        %641 = vmatpush2.msra.mxu0 0.0
        %642 = vmatprep.subr.mxu0 0.0
        %643 = vmatpush2.msra.mxu0 0.0
        %644 = vmatprep.subr.mxu0 0.0
        %645 = vmatpush2.msra.mxu0 0.0
        %646 = vmatprep.subr.mxu0 0.0
        %647 = vmatpush2.msra.mxu0 0.0
        %648 = vmatprep.subr.mxu0 0.0
        %649 = vmatpush2.msra.mxu0 0.0
        %650 = vmatprep.subr.mxu0 0.0
        %651 = vmatpush2.msra.mxu0 0.0
        %652 = vmatprep.subr.mxu0 0.0
        %653 = vmatpush2.msra.mxu0 0.0
        %654 = vmatprep.subr.mxu0 0.0
        %655 = vmatpush2.msra.mxu0 0.0
        %656 = vmatprep.subr.mxu0 0.0
        %657 = vmatpush2.msra.mxu0 0.0
        %658 = vmatprep.subr.mxu0 0.0
        %659 = vmatpush2.msra.mxu0 0.0
        %660 = vmatprep.mubr.f32.mxu0 0.0
        %661 = vmatmul.mubr.f32.gmra.mxu0 %v384
        %v662 = vpop.f32.mrf.mxu0
        %v663 = vadd.f32 %v593, %v662
        %v664 = vpop.f32.mrf.mxu0
        %665 = vdwg.mxu0
        %v666 = vmax.f32 %v663, 0.0
        %v667 = vld [vmem:[#allocation7] sm:$0xff]
        %v668 = vld [vmem:[#allocation7 + $0x8] sm:$0xff]
        %v669 = vld [vmem:[#allocation7 + $0x10] sm:$0xff]
        %v670 = vld [vmem:[#allocation7 + $0x18] sm:$0xff]
        %v671 = vld [vmem:[#allocation7 + $0x20] sm:$0xff]
        %v672 = vld [vmem:[#allocation7 + $0x28] sm:$0xff]
        %v673 = vld [vmem:[#allocation7 + $0x30] sm:$0xff]
        %v674 = vld [vmem:[#allocation7 + $0x38] sm:$0xff]
        %v675 = vld [vmem:[#allocation7 + $0x40] sm:$0xff]
        %v676 = vld [vmem:[#allocation7 + $0x48] sm:$0xff]
        %v677 = vld [vmem:[#allocation7 + $0x50] sm:$0xff]
        %v678 = vld [vmem:[#allocation7 + $0x58] sm:$0xff]
        %v679 = vld [vmem:[#allocation7 + $0x60] sm:$0xff]
        %v680 = vld [vmem:[#allocation7 + $0x68] sm:$0xff]
        %v681 = vld [vmem:[#allocation7 + $0x70] sm:$0xff]
        %v682 = vld [vmem:[#allocation7 + $0x78] sm:$0xff]
        %v683 = vld [vmem:[%s4] sm:$0x1]
        %v685 = vlaneseq
        %v686 = vshrl.u32 %v685, 7
        %v687 = vsub.s32 0, %v686
        %v688 = vrot.slane %v683, %v687
        %690 = vmatprep.subr.mxu0 0.0
        %691 = vmatpush1.msra.mxu0 %v682
        %692 = vmatprep.subr.mxu0 0.0
        %693 = vmatpush1.msra.mxu0 %v681
        %694 = vmatprep.subr.mxu0 0.0
        %695 = vmatpush1.msra.mxu0 %v680
        %696 = vmatprep.subr.mxu0 0.0
        %697 = vmatpush1.msra.mxu0 %v679
        %698 = vmatprep.subr.mxu0 0.0
        %699 = vmatpush1.msra.mxu0 %v678
        %700 = vmatprep.subr.mxu0 0.0
        %701 = vmatpush1.msra.mxu0 %v677
        %702 = vmatprep.subr.mxu0 0.0
        %703 = vmatpush1.msra.mxu0 %v676
        %704 = vmatprep.subr.mxu0 0.0
        %705 = vmatpush1.msra.mxu0 %v675
        %706 = vmatprep.subr.mxu0 0.0
        %707 = vmatpush1.msra.mxu0 %v674
        %708 = vmatprep.subr.mxu0 0.0
        %709 = vmatpush1.msra.mxu0 %v673
        %710 = vmatprep.subr.mxu0 0.0
        %711 = vmatpush1.msra.mxu0 %v672
        %712 = vmatprep.subr.mxu0 0.0
        %713 = vmatpush1.msra.mxu0 %v671
        %714 = vmatprep.subr.mxu0 0.0
        %715 = vmatpush1.msra.mxu0 %v670
        %716 = vmatprep.subr.mxu0 0.0
        %717 = vmatpush1.msra.mxu0 %v669
        %718 = vmatprep.subr.mxu0 0.0
        %719 = vmatpush1.msra.mxu0 %v668
        %720 = vmatprep.subr.mxu0 0.0
        %721 = vmatpush1.msra.mxu0 %v667
        %722 = vmatprep.subr.mxu0 0.0
        %723 = vmatpush2.msra.mxu0 0.0
        %724 = vmatprep.subr.mxu0 0.0
        %725 = vmatpush2.msra.mxu0 0.0
        %726 = vmatprep.subr.mxu0 0.0
        %727 = vmatpush2.msra.mxu0 0.0
        %728 = vmatprep.subr.mxu0 0.0
        %729 = vmatpush2.msra.mxu0 0.0
        %730 = vmatprep.subr.mxu0 0.0
        %731 = vmatpush2.msra.mxu0 0.0
        %732 = vmatprep.subr.mxu0 0.0
        %733 = vmatpush2.msra.mxu0 0.0
        %734 = vmatprep.subr.mxu0 0.0
        %735 = vmatpush2.msra.mxu0 0.0
        %736 = vmatprep.subr.mxu0 0.0
        %737 = vmatpush2.msra.mxu0 0.0
        %738 = vmatprep.subr.mxu0 0.0
        %739 = vmatpush2.msra.mxu0 0.0
        %740 = vmatprep.subr.mxu0 0.0
        %741 = vmatpush2.msra.mxu0 0.0
        %742 = vmatprep.subr.mxu0 0.0
        %743 = vmatpush2.msra.mxu0 0.0
        %744 = vmatprep.subr.mxu0 0.0
        %745 = vmatpush2.msra.mxu0 0.0
        %746 = vmatprep.subr.mxu0 0.0
        %747 = vmatpush2.msra.mxu0 0.0
        %748 = vmatprep.subr.mxu0 0.0
        %749 = vmatpush2.msra.mxu0 0.0
        %750 = vmatprep.subr.mxu0 0.0
        %751 = vmatpush2.msra.mxu0 0.0
        %752 = vmatprep.subr.mxu0 0.0
        %753 = vmatpush2.msra.mxu0 0.0
        %754 = vmatprep.mubr.f32.mxu0 0.0
        %755 = vmatmul.mubr.f32.gmra.mxu0 %v666
        %v756 = vpop.f32.mrf.mxu0
        %v757 = vadd.f32 %v688, %v756
        %v758 = vpop.f32.mrf.mxu0
        %759 = vdwg.mxu0
        %760 = vst [vmem:[%s269] sm:$0xff] %v757
        %s761 = sand.u32 %s141, 1
        %s762 = scalar_lea.sflag [#allocation4], %s761
        %s763 = sand.u32 %s141, 1
        %s764 = smul.addr %s763, 8
        %s765 = scalar_lea.vmem [#allocation8], %s764
        // Predicated region
        $region53: #{mlp_forward.1} parent=39 // pred_check
          %p766 = pneg %p151
        $region54: #{mlp_forward.1} parent=39 // pred_check_branch
          %768 = sbr.rel (%p766) target = $region56
        $region55: #{mlp_forward.1} parent=39 // pred_region
          %s770 = ssub.s32 128, 128
          %771 = vsyncadd %s762, %s770
          %s772 = smul.addr %s23, 128
          %s773 = scalar_lea.hbm %s5, %s772
          %s775 = sshll.u32 %s765, 4
          %s776 = int_to_ptr.vmem [resolvable:$true] %s775
          %778 = dma.vmem_to_hbm [thread:$0]  %s776, 128, %s773, %s762
        $region56: #{mlp_forward.1} parent=39 // pred_fallthru
          _
      $region40: #{mlp_forward.1} parent=5 // pred_fallthru
        _
      %p779 = scmp.le.s32.totalorder 2, %s18
      // Predicated region
      $region57: #{mlp_forward.1} parent=5 // pred_check
        %p780 = pneg %p779
      $region58: #{mlp_forward.1} parent=5 // pred_check_branch
        %782 = sbr.rel (%p780) target = $region60
      $region59: #{mlp_forward.1} parent=5 // pred_region
        %s783 = ssub.s32 %s18, 2
        // Predicated region
        $region61: #{mlp_forward.1} parent=59 // pred_check
          %p784 = pneg %p157
        $region62: #{mlp_forward.1} parent=59 // pred_check_branch
          %786 = sbr.rel (%p784) target = $region64
        $region63: #{mlp_forward.1} parent=59 // pred_region
          %s787 = sand.u32 %s142, 1
          %s788 = scalar_lea.sflag [#allocation4], %s787
          %s789 = sand.u32 %s142, 1
          %s790 = smul.addr %s789, 8
          %s791 = scalar_lea.vmem [#allocation8], %s790
          %792 = dma.done %s788, 128
        $region64: #{mlp_forward.1} parent=59 // pred_fallthru
          _
      $region60: #{mlp_forward.1} parent=5 // pred_fallthru
        _
    $region6: #{mlp_forward.1} parent=1 // loop_footer
      %s22 = sadd.s32 1, %s18
    $region7: #{mlp_forward.1} parent=1 // loop_footer_branch
      %17 = sbr.rel target = $region3
    $region8: #{mlp_forward.1} parent=1 // loop_exit
      _
    %793 = vsyncpa [#allocation3], 1
    %s794 = scalar_lea.sflag [#allocation3], 1
    %795 = vsyncpa %s794, 1
    %796 = vsyncpa [#allocation6], 1
    %797 = vsyncpa [#allocation4], 1
    %s798 = scalar_lea.sflag [#allocation4], 1
    %799 = vsyncpa %s798, 1

</llo_original>
